<compile_context>
chip_gen: v5e
topology: v5e:2x2
jax: 0.10.0
libtpu: 0.0.40
codegen_flags: <defaults>
</compile_context>

<pallas_src>
import functools
import math

import jax
import jax.numpy as jnp
from jax.experimental import pallas as pl
from jax.experimental.pallas import tpu as pltpu

_PI_CONST = 3.14159265  # exact constant used by the PyTorch code


def _cos_m_theta(c, m):
    """Chebyshev cos(m*theta) as a polynomial of cos(theta), Horner form."""
    if m == 0:
        return jnp.ones_like(c)
    if m == 1:
        return c
    t = c * c
    if m == 2:
        return 2.0 * t - 1.0
    if m == 3:
        return c * (4.0 * t - 3.0)
    if m == 4:
        return t * (8.0 * t - 8.0) + 1.0
    if m == 5:
        return c * (t * (16.0 * t - 20.0) + 5.0)
    raise ValueError("m must be in [0, 5]")


def angle_linear_kernel(x_ref, w_ref, xlen_ref, cos_ref, phi_ref, *, m):
    # (tm, I) @ (I, tn) on the MXU, f32 accumulation.
    raw = jnp.dot(x_ref[...], w_ref[...], preferred_element_type=jnp.float32)

    x_len = xlen_ref[...]                      # (tm, 1) f32
    inv_x = pl.reciprocal(x_len)               # EUP; exact (approx=False default)

    # Weight columns are unit-norm (done once in prepare_angle_linear_weight),
    # so cos(theta) = raw / ||x||.
    ct = jnp.clip(raw * inv_x, -1.0, 1.0)

    cos_m = _cos_m_theta(ct, m)

    # k = floor(m * acos(ct) / PI) via monotone thresholds on cos(theta):
    # plain compare+add (no per-iteration select).
    k = jnp.zeros_like(ct)
    for j in range(1, m + 1):
        thr = jnp.float32(math.cos(j * _PI_CONST / m))
        k = k + (ct <= thr).astype(jnp.float32)

    # (-1)^k from a single integer parity op.
    sign = (1 - 2 * (k.astype(jnp.int32) & 1)).astype(jnp.float32)
    phi = sign * cos_m - 2.0 * k

    # cos_theta * ||x|| == clip(raw, -||x||, +||x||): avoids a divide->multiply
    # round trip and is exact irrespective of the reciprocal's rounding.
    cos_ref[...] = jnp.clip(raw, -x_len, x_len).astype(cos_ref.dtype)
    phi_ref[...] = (phi * x_len).astype(phi_ref.dtype)


def _round_up(v, mult):
    return ((v + mult - 1) // mult) * mult


def prepare_angle_linear_weight(weight, mxu_dtype=jnp.bfloat16):
    """Fold the PyTorch column renorm (renorm(2,1,1e-5)*1e5) together with the
    1/w_len divide into unit-L2 columns, and cast to the MXU dtype.

    Weights are static per step/inference: call this ONCE per weight and reuse
    the result (pass weight_prepared=True to angle_linear) to avoid ~3 extra
    HBM passes over the (I, O) weight on every forward call.
    """
    weight = weight.astype(jnp.float32)
    col_norm = jnp.sqrt(jnp.sum(weight * weight, axis=0, keepdims=True))
    return (weight / jnp.maximum(col_norm, jnp.float32(1e-30))).astype(mxu_dtype)


def angle_linear(x, weight, m=3, *, mxu_dtype=jnp.bfloat16, out_dtype=jnp.float32,
                 block_b=256, block_o=512, vmem_limit_bytes=None,
                 weight_prepared=False):
    """Forward pass of AngleLinear (phiflag=True branch).

    x:      (B, in_features) float
    weight: (in_features, out_features) raw weight, OR a pre-prepared
            unit-column weight (weight_prepared=True).
    returns (cos_theta * ||x||, phi_theta * ||x||), each (B, out_features).
    """
    x = x.astype(jnp.float32)
    if weight_prepared:
        w_p = weight
        mxu_dtype = w_p.dtype
    else:
        # NOTE: in real use, cache this (see prepare_angle_linear_weight).
        w_p = prepare_angle_linear_weight(weight, mxu_dtype)

    B, I = x.shape
    I2, O = w_p.shape
    assert I == I2, "weight must be (in_features, out_features)"
    assert 0 <= m <= 5

    # Row norms of x, computed once (single O(B*I) pass); 1/||x|| is done
    # in-kernel on the EUP, so only one tiny (tm, 1) stream per grid step.
    x_len = jnp.sqrt(jnp.sum(x * x, axis=1, keepdims=True))   # (B, 1) f32
    x_mxu = x.astype(mxu_dtype)

    # ---- Tile selection: no padding, no output slice ------------------------
    # Block dims are either (8, 128)-multiples (large case, partial edge blocks
    # handled by Pallas) or equal to the full array dims (small case).
    block_b = max(8, _round_up(block_b, 8))
    block_o = max(128, _round_up(block_o, 128))
    tm = B if B <= block_b else block_b
    tn = O if O <= block_o else block_o

    in_item = jnp.dtype(mxu_dtype).itemsize
    out_item = jnp.dtype(out_dtype).itemsize

    def _vmem_bytes(tm_, tn_):
        # double-buffered inputs + double-buffered f32/out outputs (no K-tiling,
        # so x/weight tiles scale with I).
        ins = 2 * (tm_ * I * in_item + I * tn_ * in_item + tm_ * 4)
        outs = 2 * 2 * tm_ * tn_ * out_item
        return ins + outs

    # Keep tiles inside a v7x-safe budget (64 MiB physical VMEM there).
    budget = 40 * 1024 * 1024
    while _vmem_bytes(tm, tn) > budget and tn % 256 == 0 and tn > 256:
        tn //= 2
    while _vmem_bytes(tm, tn) > budget and tm % 16 == 0 and tm > 128:
        tm //= 2
    # TODO(synk): for very large in_features add a K-tiled ("arbitrary") grid
    # axis with an f32 accumulator scratch instead of shrinking tiles further.

    if vmem_limit_bytes is None:
        vmem_limit_bytes = max(32 << 20,
                               min(int(_vmem_bytes(tm, tn) * 1.5) + (4 << 20),
                                   64 << 20))

    # Grid: O-tiles outer (megacore-parallel on v7x -> each core streams a
    # disjoint half of the weight once), B-tiles inner -> the (I, tn) weight
    # slab stays VMEM-resident across the batch sweep.
    grid = (pl.cdiv(O, tn), pl.cdiv(B, tm))

    kern = functools.partial(angle_linear_kernel, m=m)
    cos_t, phi_t = pl.pallas_call(
        kern,
        out_shape=(
            jax.ShapeDtypeStruct((B, O), out_dtype),
            jax.ShapeDtypeStruct((B, O), out_dtype),
        ),
        grid=grid,
        in_specs=[
            pl.BlockSpec((tm, I), lambda jo, ib: (ib, 0)),   # x tile
            pl.BlockSpec((I, tn), lambda jo, ib: (0, jo)),   # weight tile (resident over ib)
            pl.BlockSpec((tm, 1), lambda jo, ib: (ib, 0)),   # ||x||
        ],
        out_specs=(
            pl.BlockSpec((tm, tn), lambda jo, ib: (ib, jo)),
            pl.BlockSpec((tm, tn), lambda jo, ib: (ib, jo)),
        ),
        compiler_params=pltpu.CompilerParams(
            dimension_semantics=("parallel", "arbitrary"),
            vmem_limit_bytes=vmem_limit_bytes,
        ),
    )(x_mxu, w_p, x_len)

    return cos_t, phi_t


# Chebyshev table (reference only), identical to the PyTorch module.
_MLAMBDA = {
    0: lambda c: c * 0.0 + 1.0,
    1: lambda c: c,
    2: lambda c: 2.0 * c**2 - 1.0,
    3: lambda c: 4.0 * c**3 - 3.0 * c,
    4: lambda c: 8.0 * c**4 - 8.0 * c**2 + 1.0,
    5: lambda c: 16.0 * c**5 - 20.0 * c**3 + 5.0 * c,
}


def _reference(x, weight, m=3):
    """Pure-JAX reference mirroring the PyTorch forward (phiflag=True)."""
    col_norm = jnp.sqrt(jnp.sum(weight * weight, axis=0, keepdims=True))
    scale = jnp.minimum(1.0, 1e-5 / col_norm)
    ww = weight * scale * 1e5
    x_len = jnp.sqrt(jnp.sum(x * x, axis=1, keepdims=True))
    w_len = jnp.sqrt(jnp.sum(ww * ww, axis=0, keepdims=True))
    ct = jnp.clip((x @ ww) / x_len / w_len, -1.0, 1.0)
    cos_m = _MLAMBDA[m](ct)
    theta = jnp.arccos(ct)
    k = jnp.floor(m * theta / _PI_CONST)
    sign = 1.0 - 2.0 * (k % 2.0)
    phi = sign * cos_m - 2.0 * k
    return ct * x_len, phi * x_len


# TODO(synk): phiflag=False branch (myphi Taylor series) not implemented; the
# module default (phiflag=True) path is what this kernel covers.

if __name__ == "__main__":
    key = jax.random.PRNGKey(0)
    kx, kw = jax.random.split(key)

    batch, in_features, out_features, m = 8, 64, 32, 3

    x = jax.random.normal(kx, (batch, in_features), dtype=jnp.float32)

    # Deterministic init mirroring the module __init__:
    # uniform(-1, 1), renorm columns to 1e-5, scale by 1e5.
    w = jax.random.uniform(kw, (in_features, out_features),
                           minval=-1.0, maxval=1.0, dtype=jnp.float32)
    w_col_norm = jnp.sqrt(jnp.sum(w * w, axis=0, keepdims=True))
    w = w * jnp.minimum(1.0, 1e-5 / w_col_norm) * 1e5

    ref_cos, ref_phi = _reference(x, w, m=m)

    # f32 MXU operands: tight correctness check against the PyTorch-style ref.
    cos_t, phi_t = angle_linear(x, w, m=m, mxu_dtype=jnp.float32)
    jax.block_until_ready((cos_t, phi_t))
    assert cos_t.shape == (batch, out_features) and phi_t.shape == (batch, out_features)
    assert jnp.allclose(cos_t, ref_cos, atol=1e-4, rtol=1e-4)
    assert jnp.allclose(phi_t, ref_phi, atol=1e-4, rtol=1e-4)

    # Default production path: bf16 MXU operands with the weight prepared ONCE
    # (cached column-normalized / cast weight), f32 accumulation & margin math.
    # cos output checked with a relaxed tolerance (bf16 operand rounding);
    # phi is only sanity-checked (threshold crossings can flip k by 1 in bf16).
    w_prepped = prepare_angle_linear_weight(w, jnp.bfloat16)
    cos_b, phi_b = angle_linear(x, w_prepped, m=m, weight_prepared=True)
    jax.block_until_ready((cos_b, phi_b))
    assert jnp.allclose(cos_b, ref_cos, atol=0.15, rtol=0.05)
    assert bool(jnp.all(jnp.isfinite(phi_b)))

    print("KERNEL_OK")
</pallas_src>

<mosaic_0001>
module attributes {stable_mosaic.version = 11 : i64} {
  func.func @angle_linear_kernel(%arg0: i32, %arg1: i32, %arg2: memref<8x64xf32, #tpu.memory_space<vmem>>, %arg3: memref<64x32xf32, #tpu.memory_space<vmem>>, %arg4: memref<8x1xf32, #tpu.memory_space<vmem>>, %arg5: memref<8x32xf32, #tpu.memory_space<vmem>>, %arg6: memref<8x32xf32, #tpu.memory_space<vmem>>) attributes {dimension_semantics = [#tpu.dimension_semantics<parallel>, #tpu.dimension_semantics<arbitrary>], iteration_bounds = array<i64: 1, 1>, scalar_prefetch = 0 : i64, scratch_operands = 0 : i64, tpu.core_type = #tpu.core_type<tc>, window_params = [{transform_indices = @transform_0, window_bounds = array<i64: 8, 64>}, {transform_indices = @transform_1, window_bounds = array<i64: 64, 32>}, {transform_indices = @transform_2, window_bounds = array<i64: 8, 1>}, {transform_indices = @transform_3, window_bounds = array<i64: 8, 32>}, {transform_indices = @transform_4, window_bounds = array<i64: 8, 32>}]} {
    %c0 = arith.constant 0 : index
    %c0_0 = arith.constant 0 : index
    %0 = vector.load %arg2[%c0, %c0_0] : memref<8x64xf32, #tpu.memory_space<vmem>>, vector<8x64xf32>
    %c0_1 = arith.constant 0 : index
    %c0_2 = arith.constant 0 : index
    %1 = vector.load %arg3[%c0_1, %c0_2] : memref<64x32xf32, #tpu.memory_space<vmem>>, vector<64x32xf32>
    %cst = arith.constant dense<0.000000e+00> : vector<8x32xf32>
    %2 = tpu.matmul %0, %1, %cst {dimension_numbers = #tpu.dot_dimension_numbers<[1], [0], [0], [1], [0, 0, 1, 1], [], []>} : vector<8x64xf32>, vector<64x32xf32>, vector<8x32xf32> -> vector<8x32xf32>
    %c0_3 = arith.constant 0 : index
    %c0_4 = arith.constant 0 : index
    %3 = vector.load %arg4[%c0_3, %c0_4] : memref<8x1xf32, #tpu.memory_space<vmem>>, vector<8x1xf32>
    %4 = tpu.reciprocal %3 : vector<8x1xf32> -> vector<8x1xf32>
    %5 = vector.broadcast %4 : vector<8x1xf32> to vector<8x32xf32>
    %6 = arith.mulf %2, %5 : vector<8x32xf32>
    %cst_5 = arith.constant -1.000000e+00 : f32
    %cst_6 = arith.constant 1.000000e+00 : f32
    %7 = vector.broadcast %cst_5 : f32 to vector<8x32xf32>
    %8 = arith.maximumf %7, %6 : vector<8x32xf32>
    %9 = vector.broadcast %cst_6 : f32 to vector<8x32xf32>
    %10 = arith.minimumf %9, %8 : vector<8x32xf32>
    %11 = arith.mulf %10, %10 : vector<8x32xf32>
    %cst_7 = arith.constant 4.000000e+00 : f32
    %12 = vector.broadcast %cst_7 : f32 to vector<8x32xf32>
    %13 = arith.mulf %12, %11 : vector<8x32xf32>
    %cst_8 = arith.constant 3.000000e+00 : f32
    %14 = vector.broadcast %cst_8 : f32 to vector<8x32xf32>
    %15 = arith.subf %13, %14 : vector<8x32xf32>
    %16 = arith.mulf %10, %15 : vector<8x32xf32>
    %cst_9 = arith.constant 0.000000e+00 : f32
    %17 = vector.broadcast %cst_9 : f32 to vector<8x32xf32>
    %cst_10 = arith.constant 5.000000e-01 : f32
    %18 = vector.broadcast %cst_10 : f32 to vector<8x32xf32>
    %19 = arith.cmpf ole, %10, %18 : vector<8x32xf32>
    %20 = arith.extui %19 : vector<8x32xi1> to vector<8x32xi32>
    %21 = arith.sitofp %20 : vector<8x32xi32> to vector<8x32xf32>
    %22 = arith.addf %17, %21 : vector<8x32xf32>
    %cst_11 = arith.constant -5.000000e-01 : f32
    %23 = vector.broadcast %cst_11 : f32 to vector<8x32xf32>
    %24 = arith.cmpf ole, %10, %23 : vector<8x32xf32>
    %25 = arith.extui %24 : vector<8x32xi1> to vector<8x32xi32>
    %26 = arith.sitofp %25 : vector<8x32xi32> to vector<8x32xf32>
    %27 = arith.addf %22, %26 : vector<8x32xf32>
    %cst_12 = arith.constant -1.000000e+00 : f32
    %28 = vector.broadcast %cst_12 : f32 to vector<8x32xf32>
    %29 = arith.cmpf ole, %10, %28 : vector<8x32xf32>
    %30 = arith.extui %29 : vector<8x32xi1> to vector<8x32xi32>
    %31 = arith.sitofp %30 : vector<8x32xi32> to vector<8x32xf32>
    %32 = arith.addf %27, %31 : vector<8x32xf32>
    %33 = arith.fptosi %32 : vector<8x32xf32> to vector<8x32xi32>
    %c1_i32 = arith.constant 1 : i32
    %34 = vector.broadcast %c1_i32 : i32 to vector<8x32xi32>
    %35 = arith.andi %33, %34 : vector<8x32xi32>
    %c2_i32 = arith.constant 2 : i32
    %36 = vector.broadcast %c2_i32 : i32 to vector<8x32xi32>
    %37 = arith.muli %36, %35 : vector<8x32xi32>
    %c1_i32_13 = arith.constant 1 : i32
    %38 = vector.broadcast %c1_i32_13 : i32 to vector<8x32xi32>
    %39 = arith.subi %38, %37 : vector<8x32xi32>
    %40 = arith.sitofp %39 : vector<8x32xi32> to vector<8x32xf32>
    %41 = arith.mulf %40, %16 : vector<8x32xf32>
    %cst_14 = arith.constant 2.000000e+00 : f32
    %42 = vector.broadcast %cst_14 : f32 to vector<8x32xf32>
    %43 = arith.mulf %42, %32 : vector<8x32xf32>
    %44 = arith.subf %41, %43 : vector<8x32xf32>
    %cst_15 = arith.constant 0.000000e+00 : f32
    %45 = vector.broadcast %cst_15 : f32 to vector<8x1xf32>
    %46 = arith.subf %45, %3 : vector<8x1xf32>
    %47 = vector.broadcast %46 : vector<8x1xf32> to vector<8x32xf32>
    %48 = arith.maximumf %47, %2 : vector<8x32xf32>
    %49 = vector.broadcast %3 : vector<8x1xf32> to vector<8x32xf32>
    %50 = arith.minimumf %49, %48 : vector<8x32xf32>
    %c0_16 = arith.constant 0 : index
    %c0_17 = arith.constant 0 : index
    %51 = vector.load %arg5[%c0_16, %c0_17] : memref<8x32xf32, #tpu.memory_space<vmem>>, vector<8x32xf32>
    tpu.vector_store %arg5[%c0_16, %c0_17], %50 {strides = array<i32>} : memref<8x32xf32, #tpu.memory_space<vmem>>, vector<8x32xf32>,
    %52 = vector.broadcast %3 : vector<8x1xf32> to vector<8x32xf32>
    %53 = arith.mulf %44, %52 : vector<8x32xf32>
    %c0_18 = arith.constant 0 : index
    %c0_19 = arith.constant 0 : index
    %54 = vector.load %arg6[%c0_18, %c0_19] : memref<8x32xf32, #tpu.memory_space<vmem>>, vector<8x32xf32>
    tpu.vector_store %arg6[%c0_18, %c0_19], %53 {strides = array<i32>} : memref<8x32xf32, #tpu.memory_space<vmem>>, vector<8x32xf32>,
    return
  }
  func.func @transform_0(%arg0: i32, %arg1: i32) -> (i32, i32) {
    %c0_i32 = arith.constant 0 : i32
    %c0_i32_0 = arith.constant 0 : i32
    return %arg1, %c0_i32 : i32, i32
  }
  func.func @transform_1(%arg0: i32, %arg1: i32) -> (i32, i32) {
    %c0_i32 = arith.constant 0 : i32
    %c0_i32_0 = arith.constant 0 : i32
    return %c0_i32, %arg0 : i32, i32
  }
  func.func @transform_2(%arg0: i32, %arg1: i32) -> (i32, i32) {
    %c0_i32 = arith.constant 0 : i32
    %c0_i32_0 = arith.constant 0 : i32
    return %arg1, %c0_i32 : i32, i32
  }
  func.func @transform_3(%arg0: i32, %arg1: i32) -> (i32, i32) {
    %c0_i32 = arith.constant 0 : i32
    return %arg1, %arg0 : i32, i32
  }
  func.func @transform_4(%arg0: i32, %arg1: i32) -> (i32, i32) {
    %c0_i32 = arith.constant 0 : i32
    return %arg1, %arg0 : i32, i32
  }
}

</mosaic_0001>

<llo_original>
// kernel: tpu_custom_call.1
$region0: #{tpu_custom_call.1}
  #allocation0 [shape = 'u32[]', space=smem, size = 0x4, offset = 0x4, fixed_abs, tag = 'smem constant byte address 0x4 - core index']
  #allocation1 [shape = 'u32[72,128]{1,0:T(1,128)}', space=vmem, size = 0x9000, scoped, tag = 'internal scratch']
  %s0 = inlined_call_operand.vmem [shape: f32[8,64], index: 0, kind: input, shape index: {}]
  %s1 = inlined_call_operand.vmem [shape: f32[64,32], index: 1, kind: input, shape index: {}]
  %s2 = inlined_call_operand.vmem [shape: f32[8,1], index: 2, kind: input, shape index: {}]
  %s3 = inlined_call_operand.hbm [shape: f32[8,32], index: 3, kind: output, shape index: {0}]
  %s4 = inlined_call_operand.hbm [shape: f32[8,32], index: 4, kind: output, shape index: {1}]
  %5 = xla_tuple %s3, %s4
  %s6 = sld [smem:[#allocation0]]
  $region30: #{tpu_custom_call.1} parent=0
    _
  %s8 = ssub.s32 1, %s6
  %s9 = scalar_select 0, %s8, %s6
  $region1: #{tpu_custom_call.1} parent=0
    #allocation2 [shape = 'u8[4096]{0}', space=vmem, size = 0x1000, scoped, tag = 'output window, operand 0, single buffered']
    #allocation3 [shape = 's32[1]{0}', space=sflag, size = 0x4, scoped, tag = 'scoped memory for tpu_custom_call.1']
    #allocation4 [shape = 'u8[4096]{0}', space=vmem, size = 0x1000, scoped, tag = 'output window, operand 1, single buffered']
    #allocation5 [shape = 's32[1]{0}', space=sflag, size = 0x4, scoped, tag = 'scoped memory for tpu_custom_call.1']
    %10 = vsyncpa [#allocation3], 0
    %11 = vsyncpa [#allocation5], 0
    // Predicated region
    $region2: #{tpu_custom_call.1} parent=1 // pred_check
      _
    $region3: #{tpu_custom_call.1} parent=1 // pred_check_branch
      %13 = sbr.rel (0) target = $region5
    $region4: #{tpu_custom_call.1} parent=1 // pred_region
      _
    $region5: #{tpu_custom_call.1} parent=1 // pred_fallthru
      _
    // Predicated region
    $region6: #{tpu_custom_call.1} parent=1 // pred_check
      _
    $region7: #{tpu_custom_call.1} parent=1 // pred_check_branch
      %15 = sbr.rel (0) target = $region9
    $region8: #{tpu_custom_call.1} parent=1 // pred_region
      _
    $region9: #{tpu_custom_call.1} parent=1 // pred_fallthru
      _
    // Predicated region
    $region10: #{tpu_custom_call.1} parent=1 // pred_check
      _
    $region11: #{tpu_custom_call.1} parent=1 // pred_check_branch
      %17 = sbr.rel (0) target = $region13
    $region12: #{tpu_custom_call.1} parent=1 // pred_region
      _
    $region13: #{tpu_custom_call.1} parent=1 // pred_fallthru
      _
    %v18 = vld [vmem:[%s0] sm:$0xff]
    %v19 = vld [vmem:[%s1] sm:$0xff]
    %v20 = vld [vmem:[%s1 + $0x8] sm:$0xff]
    %v21 = vld [vmem:[%s1 + $0x10] sm:$0xff]
    %v22 = vld [vmem:[%s1 + $0x18] sm:$0xff]
    %v23 = vld [vmem:[%s1 + $0x20] sm:$0xff]
    %v24 = vld [vmem:[%s1 + $0x28] sm:$0xff]
    %v25 = vld [vmem:[%s1 + $0x30] sm:$0xff]
    %v26 = vld [vmem:[%s1 + $0x38] sm:$0xff]
    %vm27 = vcmask 523264
    %v29 = vsel %vm27, %v18, 0
    %31 = vmatpush.msra.mxu0 0.0
    %32 = vmatpush.msra.mxu0 0.0
    %33 = vmatpush.msra.mxu0 0.0
    %34 = vmatpush.msra.mxu0 0.0
    %35 = vmatpush.msra.mxu0 0.0
    %36 = vmatpush.msra.mxu0 0.0
    %37 = vmatpush.msra.mxu0 0.0
    %38 = vmatpush.msra.mxu0 0.0
    %39 = vmatpush.msra.mxu0 %v26
    %40 = vmatpush.msra.mxu0 %v25
    %41 = vmatpush.msra.mxu0 %v24
    %42 = vmatpush.msra.mxu0 %v23
    %43 = vmatpush.msra.mxu0 %v22
    %44 = vmatpush.msra.mxu0 %v21
    %45 = vmatpush.msra.mxu0 %v20
    %46 = vmatpush.msra.mxu0 %v19
    %47 = vmatmul.f32.gmra.mxu0 %v29
    %v48 = vpop.f32.mrf.mxu0
    %v49 = vadd.f32 0.0, %v48
    %50 = vdwg.mxu0
    %v51 = vld [vmem:[%s2] sm:$0xff]
    %v52 = vrcp.pop %v51
    %v53 = vmul.f32 %v51, %v52
    %v54 = vsub.f32 1.0, %v53
    %v55 = vmul.f32 %v52, %v54
    %v56 = vadd.f32 %v52, %v55
    %vm57 = vweird.f32 %v51
    %vm58 = vweird.f32 %v52
    %vm59 = vmor %vm57, %vm58
    %v60 = vsel %vm59, %v52, %v56
    %v61 = vand.u32 2147483647, %v51
    %vm62 = vcmp.eq.f32.partialorder %v61, 8.507059e+37
    %v63 = vand.u32 %v51, 2147483648
    %v64 = vor.u32 1.1754944e-38, %v63
    %v65 = vsel %vm62, %v64, %v60
    %67 = vset.pattern.permute.xlu0 0
    %68 = vperm.xlu0 %67, %v65
    %v69 = vpop.permute.xlu0 %68
    %v71 = vmul.f32 %v49, %v69
    %v72 = vmax.f32 %v71, -1.0
    %v73 = vmin.f32 %v72, 1.0
    %v74 = vmul.f32 %v73, %v73
    %v75 = vmul.f32 %v74, 4.0
    %v76 = vsub.f32 %v75, 3.0
    %v77 = vmul.f32 %v73, %v76
    %vm78 = vcmp.le.f32.partialorder %v73, 0.5
    %v79 = vsel %vm78, 1, 0
    %v80 = vcvt.s32.f32 %v79
    %v81 = vadd.f32 %v80, 0.0
    %vm82 = vcmp.le.f32.partialorder %v73, -0.5
    %v83 = vsel %vm82, 1, 0
    %v84 = vcvt.s32.f32 %v83
    %v85 = vadd.f32 %v81, %v84
    %vm86 = vcmp.le.f32.partialorder %v73, -1.0
    %v87 = vsel %vm86, 1, 0
    %v88 = vcvt.s32.f32 %v87
    %v89 = vadd.f32 %v85, %v88
    %v90 = vcvt.f32.s32.to.zero.pseudo %v89
    %v91 = vand.u32 %v90, 1
    %v92 = vmul.u32 %v91, 2
    %v93 = vsub.s32 1, %v92
    %v94 = vcvt.s32.f32 %v93
    %v95 = vmul.f32 %v94, %v77
    %v96 = vmul.f32 %v89, 2.0
    %v97 = vsub.f32 %v95, %v96
    %v98 = vsub.f32 0.0, %v51
    %100 = vset.pattern.permute.xlu0 0
    %101 = vperm.xlu0 %100, %v98
    %v102 = vpop.permute.xlu0 %101
    %v104 = vmax.f32 %v102, %v49
    %106 = vset.pattern.permute.xlu0 0
    %107 = vperm.xlu0 %106, %v51
    %v108 = vpop.permute.xlu0 %107
    %v110 = vmin.f32 %v108, %v104
    %vm111 = vcmask 261120
    %112 = vst.msk [vmem:[#allocation2] sm:$0xff] %vm111, %v110
    %v113 = vmul.f32 %v97, %v108
    %114 = vst.msk [vmem:[#allocation4] sm:$0xff] %vm111, %v113
    // Predicated region
    $region14: #{tpu_custom_call.1} parent=1 // pred_check
      _
    $region15: #{tpu_custom_call.1} parent=1 // pred_check_branch
      %116 = sbr.rel (0) target = $region17
    $region16: #{tpu_custom_call.1} parent=1 // pred_region
      %118 = vsyncadd [#allocation3], 0
      %s120 = sshll.u32 [#allocation2], 4
      %s121 = int_to_ptr.vmem [resolvable:$true] %s120
      %s122 = sshll.u32 %s3, 4
      %s123 = int_to_ptr.hbm [resolvable:$true] %s122
      %125 = dma.vmem_to_hbm [thread:$0]  %s121, 128, %s123, [#allocation3]
    $region17: #{tpu_custom_call.1} parent=1 // pred_fallthru
      _
    // Predicated region
    $region18: #{tpu_custom_call.1} parent=1 // pred_check
      _
    $region19: #{tpu_custom_call.1} parent=1 // pred_check_branch
      %127 = sbr.rel (0) target = $region21
    $region20: #{tpu_custom_call.1} parent=1 // pred_region
      %129 = vsyncadd [#allocation5], 0
      %s131 = sshll.u32 [#allocation4], 4
      %s132 = int_to_ptr.vmem [resolvable:$true] %s131
      %s133 = sshll.u32 %s4, 4
      %s134 = int_to_ptr.hbm [resolvable:$true] %s133
      %136 = dma.vmem_to_hbm [thread:$0]  %s132, 128, %s134, [#allocation5]
    $region21: #{tpu_custom_call.1} parent=1 // pred_fallthru
      _
    // Predicated region
    $region22: #{tpu_custom_call.1} parent=1 // pred_check
      _
    $region23: #{tpu_custom_call.1} parent=1 // pred_check_branch
      %138 = sbr.rel (0) target = $region25
    $region24: #{tpu_custom_call.1} parent=1 // pred_region
      %140 = dma.done [#allocation3], 128
    $region25: #{tpu_custom_call.1} parent=1 // pred_fallthru
      _
    // Predicated region
    $region26: #{tpu_custom_call.1} parent=1 // pred_check
      _
    $region27: #{tpu_custom_call.1} parent=1 // pred_check_branch
      %142 = sbr.rel (0) target = $region29
    $region28: #{tpu_custom_call.1} parent=1 // pred_region
      %144 = dma.done [#allocation5], 128
    $region29: #{tpu_custom_call.1} parent=1 // pred_fallthru
      _
    %145 = vsyncpa [#allocation3], 1
    %146 = vsyncpa [#allocation5], 1

</llo_original>
